<compile_context>
chip_gen: v6e
topology: v6e:2x2x1
jax: 0.10.0
libtpu: 0.0.40
codegen_flags: <defaults>
</compile_context>

<pallas_src>
import jax
import jax.numpy as jnp
from jax.experimental import pallas as pl
from jax.experimental.pallas import tpu as pltpu


def _controller_kernel(x_ref, stm_ref, ltn_ref, ltf_ref, ltb_ref, h0_ref,
                       c0_ref, w_gate_ref, w_out_ref, bias_ref,
                       out_ref, h_out_ref, c_out_ref):
    """Fused LSTMCell step + output projection.

    x_ref, stm_ref, ltn_ref, ltf_ref, ltb_ref : [B or 1, k_seg] input segments
    h0_ref     : [B, H]
    c0_ref     : [B, H]
    w_gate_ref : [sum(k_seg) + H, 4H]   (bf16, gate cols permuted [i,f,o,g])
    w_out_ref  : [H, O]                 (bf16)
    bias_ref   : [1, 4H + O]            (f32: [b_ih+b_hh (permuted) | b_out])
    out_ref    : [B, O]
    h_out_ref  : [B, H]
    c_out_ref  : [B, H]
    """
    H = c0_ref.shape[-1]
    c0 = c0_ref[...]

    # Gate pre-activation, accumulated per input segment against static row
    # slices of the fused weight matrix.  Seed with the fused gate bias
    # ([1, 4H] broadcasts over the batch).
    gates = bias_ref[:, :4 * H]
    off = 0
    for seg_ref in (x_ref, stm_ref, ltn_ref, ltf_ref, ltb_ref, h0_ref):
        k = seg_ref.shape[-1]
        gates = gates + jnp.dot(
            seg_ref[...].astype(w_gate_ref.dtype),
            w_gate_ref[off:off + k, :],
            preferred_element_type=jnp.float32)
        off += k

    # Gate layout after prep-time column permutation: [i | f | o | g].
    sig = jax.nn.sigmoid(gates[:, :3 * H])   # one contiguous sigmoid region
    g_g = jnp.tanh(gates[:, 3 * H:])         # one contiguous tanh region
    i_g = sig[:, 0 * H:1 * H]
    f_g = sig[:, 1 * H:2 * H]
    o_g = sig[:, 2 * H:3 * H]

    c_new = f_g * c0 + i_g * g_g
    h_new = o_g * jnp.tanh(c_new)

    out = (jnp.dot(h_new.astype(w_out_ref.dtype), w_out_ref[...],
                   preferred_element_type=jnp.float32)
           + bias_ref[:, 4 * H:])

    out_ref[...] = out.astype(out_ref.dtype)
    h_out_ref[...] = h_new.astype(h_out_ref.dtype)
    c_out_ref[...] = c_new.astype(c_out_ref.dtype)


def prepare_params(params, hidden_size, matmul_dtype=jnp.bfloat16):
    """One-time weight prep: transpose, fuse the two gate matmul weights and
    the two gate biases, permute gate columns [i,f,g,o] -> [i,f,o,g], merge
    all biases into one ref, and cast matmul operands to `matmul_dtype`
    (use jnp.float32 for bit-exact checks)."""
    H = hidden_size

    w_ih_t = params["w_ih"].T                                   # [K_in, 4H]
    w_hh_t = params["w_hh"].T                                   # [H,    4H]
    w_gate = jnp.concatenate([w_ih_t, w_hh_t], axis=0)          # [K_in+H, 4H]
    b_gate = (params["b_ih"] + params["b_hh"]).reshape(1, -1)   # [1, 4H]

    def permute_gates(a):  # [..., 4H]: [i, f, g, o] -> [i, f, o, g]
        return jnp.concatenate(
            [a[..., 0:2 * H], a[..., 3 * H:4 * H], a[..., 2 * H:3 * H]],
            axis=-1)

    b_gate = permute_gates(b_gate).astype(jnp.float32)          # [1, 4H]
    b_out = params["b_out"].reshape(1, -1).astype(jnp.float32)  # [1, O]
    return {
        "w_gate": permute_gates(w_gate).astype(matmul_dtype),   # [K_in+H, 4H]
        "w_out": params["w_out"].T.astype(matmul_dtype),        # [H, O]
        "bias": jnp.concatenate([b_gate, b_out], axis=-1),      # [1, 4H+O]
    }


def dual_memory_controller_forward(x, short_term_read, ltm_normal, ltm_forward,
                                   ltm_backward, h0, c0, prepared):
    """Returns (output, h_new, c_new). `prepared` comes from prepare_params()."""
    batch_size = short_term_read.shape[0]

    def at_least_2d(a):
        return a[None, :] if a.ndim == 1 else a

    x = at_least_2d(x)
    short_term_read = at_least_2d(short_term_read)
    ltm_normal = at_least_2d(ltm_normal)
    ltm_forward = at_least_2d(ltm_forward)
    ltm_backward = at_least_2d(ltm_backward)
    if x.shape[0] not in (1, batch_size):
        # PyTorch .expand() only broadcasts size-1 dims.
        raise ValueError(f"x batch {x.shape[0]} incompatible with {batch_size}")
    # x with leading dim 1 is broadcast inside the kernel (no wrapper op).

    B = batch_size
    H = h0.shape[-1]
    O = prepared["w_out"].shape[-1]

    vmem = pl.BlockSpec(memory_space=pltpu.MemorySpace.VMEM)

    out, h_new, c_new = pl.pallas_call(
        _controller_kernel,
        out_shape=(jax.ShapeDtypeStruct((B, O), jnp.float32),
                   jax.ShapeDtypeStruct((B, H), jnp.float32),
                   jax.ShapeDtypeStruct((B, H), jnp.float32)),
        in_specs=[vmem] * 10,
        out_specs=(vmem, vmem, vmem),
    )(x, short_term_read, ltm_normal, ltm_forward, ltm_backward, h0, c0,
      prepared["w_gate"], prepared["w_out"], prepared["bias"])

    return out, h_new, c_new


def init_params(key, input_size, hidden_size, output_size,
                memory_dim, long_term_dim):
    rnn_input_size = input_size + memory_dim + 3 * long_term_dim
    ks = jax.random.split(key, 6)
    scale = 0.1
    return {
        "w_ih": scale * jax.random.normal(ks[0], (4 * hidden_size, rnn_input_size), jnp.float32),
        "w_hh": scale * jax.random.normal(ks[1], (4 * hidden_size, hidden_size), jnp.float32),
        "b_ih": scale * jax.random.normal(ks[2], (4 * hidden_size,), jnp.float32),
        "b_hh": scale * jax.random.normal(ks[3], (4 * hidden_size,), jnp.float32),
        "w_out": scale * jax.random.normal(ks[4], (output_size, hidden_size), jnp.float32),
        "b_out": scale * jax.random.normal(ks[5], (output_size,), jnp.float32),
    }


if __name__ == "__main__":
    # Small shapes consistent with the module.
    B = 2
    input_size = 8
    hidden_size = 32
    output_size = 16
    memory_size = 8        # unused in forward (only in generate_* helpers)
    memory_dim = 8
    long_term_nodes = 8    # unused in forward
    long_term_dim = 8

    key = jax.random.PRNGKey(0)
    pk, xk, sk, nk, fk, bk = jax.random.split(key, 6)

    params = init_params(pk, input_size, hidden_size, output_size,
                         memory_dim, long_term_dim)
    # One-time weight prep (fusion / transpose / gate permutation / bf16 cast).
    prepared = prepare_params(params, hidden_size)

    x = jax.random.normal(xk, (B, input_size), jnp.float32)
    short_term_read = jax.random.normal(sk, (B, memory_dim), jnp.float32)
    ltm_normal = jax.random.normal(nk, (B, long_term_dim), jnp.float32)
    ltm_forward = jax.random.normal(fk, (B, long_term_dim), jnp.float32)
    ltm_backward = jax.random.normal(bk, (B, long_term_dim), jnp.float32)

    # reset(batch_size): zero hidden/cell state.
    h0 = jnp.zeros((B, hidden_size), jnp.float32)
    c0 = jnp.zeros((B, hidden_size), jnp.float32)

    fwd = jax.jit(dual_memory_controller_forward)
    out, h_new, c_new = fwd(x, short_term_read, ltm_normal, ltm_forward,
                            ltm_backward, h0, c0, prepared)
    jax.block_until_ready((out, h_new, c_new))

    # Pure-JAX f32 reference of LSTMCell + output layer semantics.
    # Kernel uses bf16 matmul operands (f32 accumulation), so tolerance is
    # relaxed to 2e-2; prepare_params(..., matmul_dtype=jnp.float32) would
    # restore bit-level agreement at 1e-5.
    combined = jnp.concatenate(
        [x, short_term_read, ltm_normal, ltm_forward, ltm_backward], axis=-1)
    gates = (combined @ params["w_ih"].T + params["b_ih"]
             + h0 @ params["w_hh"].T + params["b_hh"])
    H = hidden_size
    i_g = jax.nn.sigmoid(gates[:, 0 * H:1 * H])
    f_g = jax.nn.sigmoid(gates[:, 1 * H:2 * H])
    g_g = jnp.tanh(gates[:, 2 * H:3 * H])
    o_g = jax.nn.sigmoid(gates[:, 3 * H:4 * H])
    c_ref = f_g * c0 + i_g * g_g
    h_ref = o_g * jnp.tanh(c_ref)
    out_ref = h_ref @ params["w_out"].T + params["b_out"]

    assert jnp.allclose(out, out_ref, atol=2e-2), "output mismatch"
    assert jnp.allclose(h_new, h_ref, atol=2e-2), "hidden mismatch"
    assert jnp.allclose(c_new, c_ref, atol=2e-2), "cell mismatch"

    print("KERNEL_OK")
</pallas_src>

<mosaic_0001>
module attributes {stable_mosaic.version = 11 : i64} {
  func.func @_controller_kernel(%arg0: memref<2x8xf32, #tpu.memory_space<vmem>>, %arg1: memref<2x8xf32, #tpu.memory_space<vmem>>, %arg2: memref<2x8xf32, #tpu.memory_space<vmem>>, %arg3: memref<2x8xf32, #tpu.memory_space<vmem>>, %arg4: memref<2x8xf32, #tpu.memory_space<vmem>>, %arg5: memref<2x32xf32, #tpu.memory_space<vmem>>, %arg6: memref<2x32xf32, #tpu.memory_space<vmem>>, %arg7: memref<72x128xbf16, #tpu.memory_space<vmem>>, %arg8: memref<32x16xbf16, #tpu.memory_space<vmem>>, %arg9: memref<1x144xf32, #tpu.memory_space<vmem>>, %arg10: memref<2x16xf32, #tpu.memory_space<vmem>>, %arg11: memref<2x32xf32, #tpu.memory_space<vmem>>, %arg12: memref<2x32xf32, #tpu.memory_space<vmem>>) attributes {dimension_semantics = [], scalar_prefetch = 0 : i64, scratch_operands = 0 : i64, tpu.core_type = #tpu.core_type<tc>} {
    %c0 = arith.constant 0 : index
    %c0_0 = arith.constant 0 : index
    %0 = vector.load %arg6[%c0, %c0_0] : memref<2x32xf32, #tpu.memory_space<vmem>>, vector<2x32xf32>
    %c0_1 = arith.constant 0 : index
    %c0_2 = arith.constant 0 : index
    %1 = vector.load %arg9[%c0_1, %c0_2] : memref<1x144xf32, #tpu.memory_space<vmem>>, vector<1x128xf32>
    %c0_3 = arith.constant 0 : index
    %c0_4 = arith.constant 0 : index
    %2 = vector.load %arg0[%c0_3, %c0_4] : memref<2x8xf32, #tpu.memory_space<vmem>>, vector<2x8xf32>
    %3 = arith.truncf %2 : vector<2x8xf32> to vector<2x8xbf16>
    %c0_5 = arith.constant 0 : index
    %c0_6 = arith.constant 0 : index
    %4 = vector.load %arg7[%c0_5, %c0_6] : memref<72x128xbf16, #tpu.memory_space<vmem>>, vector<8x128xbf16>
    %cst = arith.constant dense<0.000000e+00> : vector<2x128xf32>
    %5 = tpu.matmul %3, %4, %cst {dimension_numbers = #tpu.dot_dimension_numbers<[1], [0], [0], [1], [0, 0, 1, 1], [], []>} : vector<2x8xbf16>, vector<8x128xbf16>, vector<2x128xf32> -> vector<2x128xf32>
    %6 = vector.broadcast %1 : vector<1x128xf32> to vector<2x128xf32>
    %7 = arith.addf %6, %5 : vector<2x128xf32>
    %c0_7 = arith.constant 0 : index
    %c0_8 = arith.constant 0 : index
    %8 = vector.load %arg1[%c0_7, %c0_8] : memref<2x8xf32, #tpu.memory_space<vmem>>, vector<2x8xf32>
    %9 = arith.truncf %8 : vector<2x8xf32> to vector<2x8xbf16>
    %c8 = arith.constant 8 : index
    %c0_9 = arith.constant 0 : index
    %10 = vector.load %arg7[%c8, %c0_9] : memref<72x128xbf16, #tpu.memory_space<vmem>>, vector<8x128xbf16>
    %cst_10 = arith.constant dense<0.000000e+00> : vector<2x128xf32>
    %11 = tpu.matmul %9, %10, %cst_10 {dimension_numbers = #tpu.dot_dimension_numbers<[1], [0], [0], [1], [0, 0, 1, 1], [], []>} : vector<2x8xbf16>, vector<8x128xbf16>, vector<2x128xf32> -> vector<2x128xf32>
    %12 = arith.addf %7, %11 : vector<2x128xf32>
    %c0_11 = arith.constant 0 : index
    %c0_12 = arith.constant 0 : index
    %13 = vector.load %arg2[%c0_11, %c0_12] : memref<2x8xf32, #tpu.memory_space<vmem>>, vector<2x8xf32>
    %14 = arith.truncf %13 : vector<2x8xf32> to vector<2x8xbf16>
    %c16 = arith.constant 16 : index
    %c0_13 = arith.constant 0 : index
    %15 = vector.load %arg7[%c16, %c0_13] : memref<72x128xbf16, #tpu.memory_space<vmem>>, vector<8x128xbf16>
    %cst_14 = arith.constant dense<0.000000e+00> : vector<2x128xf32>
    %16 = tpu.matmul %14, %15, %cst_14 {dimension_numbers = #tpu.dot_dimension_numbers<[1], [0], [0], [1], [0, 0, 1, 1], [], []>} : vector<2x8xbf16>, vector<8x128xbf16>, vector<2x128xf32> -> vector<2x128xf32>
    %17 = arith.addf %12, %16 : vector<2x128xf32>
    %c0_15 = arith.constant 0 : index
    %c0_16 = arith.constant 0 : index
    %18 = vector.load %arg3[%c0_15, %c0_16] : memref<2x8xf32, #tpu.memory_space<vmem>>, vector<2x8xf32>
    %19 = arith.truncf %18 : vector<2x8xf32> to vector<2x8xbf16>
    %c24 = arith.constant 24 : index
    %c0_17 = arith.constant 0 : index
    %20 = vector.load %arg7[%c24, %c0_17] : memref<72x128xbf16, #tpu.memory_space<vmem>>, vector<8x128xbf16>
    %cst_18 = arith.constant dense<0.000000e+00> : vector<2x128xf32>
    %21 = tpu.matmul %19, %20, %cst_18 {dimension_numbers = #tpu.dot_dimension_numbers<[1], [0], [0], [1], [0, 0, 1, 1], [], []>} : vector<2x8xbf16>, vector<8x128xbf16>, vector<2x128xf32> -> vector<2x128xf32>
    %22 = arith.addf %17, %21 : vector<2x128xf32>
    %c0_19 = arith.constant 0 : index
    %c0_20 = arith.constant 0 : index
    %23 = vector.load %arg4[%c0_19, %c0_20] : memref<2x8xf32, #tpu.memory_space<vmem>>, vector<2x8xf32>
    %24 = arith.truncf %23 : vector<2x8xf32> to vector<2x8xbf16>
    %c32 = arith.constant 32 : index
    %c0_21 = arith.constant 0 : index
    %25 = vector.load %arg7[%c32, %c0_21] : memref<72x128xbf16, #tpu.memory_space<vmem>>, vector<8x128xbf16>
    %cst_22 = arith.constant dense<0.000000e+00> : vector<2x128xf32>
    %26 = tpu.matmul %24, %25, %cst_22 {dimension_numbers = #tpu.dot_dimension_numbers<[1], [0], [0], [1], [0, 0, 1, 1], [], []>} : vector<2x8xbf16>, vector<8x128xbf16>, vector<2x128xf32> -> vector<2x128xf32>
    %27 = arith.addf %22, %26 : vector<2x128xf32>
    %c0_23 = arith.constant 0 : index
    %c0_24 = arith.constant 0 : index
    %28 = vector.load %arg5[%c0_23, %c0_24] : memref<2x32xf32, #tpu.memory_space<vmem>>, vector<2x32xf32>
    %29 = arith.truncf %28 : vector<2x32xf32> to vector<2x32xbf16>
    %c40 = arith.constant 40 : index
    %c0_25 = arith.constant 0 : index
    %30 = vector.load %arg7[%c40, %c0_25] : memref<72x128xbf16, #tpu.memory_space<vmem>>, vector<32x128xbf16>
    %cst_26 = arith.constant dense<0.000000e+00> : vector<2x128xf32>
    %31 = tpu.matmul %29, %30, %cst_26 {dimension_numbers = #tpu.dot_dimension_numbers<[1], [0], [0], [1], [0, 0, 1, 1], [], []>} : vector<2x32xbf16>, vector<32x128xbf16>, vector<2x128xf32> -> vector<2x128xf32>
    %32 = arith.addf %27, %31 : vector<2x128xf32>
    %33 = vector.extract_strided_slice %32 {offsets = [0, 0], sizes = [2, 96], strides = [1, 1]} : vector<2x128xf32> to vector<2x96xf32>
    %34 = arith.negf %33 : vector<2x96xf32>
    %35 = math.exp %34 : vector<2x96xf32>
    %cst_27 = arith.constant 1.000000e+00 : f32
    %36 = vector.broadcast %cst_27 : f32 to vector<2x96xf32>
    %37 = arith.addf %36, %35 : vector<2x96xf32>
    %38 = arith.divf %36, %37 : vector<2x96xf32>
    %39 = vector.extract_strided_slice %32 {offsets = [0, 96], sizes = [2, 32], strides = [1, 1]} : vector<2x128xf32> to vector<2x32xf32>
    %40 = math.tanh %39 : vector<2x32xf32>
    %41 = vector.extract_strided_slice %38 {offsets = [0, 0], sizes = [2, 32], strides = [1, 1]} : vector<2x96xf32> to vector<2x32xf32>
    %42 = vector.extract_strided_slice %38 {offsets = [0, 32], sizes = [2, 32], strides = [1, 1]} : vector<2x96xf32> to vector<2x32xf32>
    %43 = vector.extract_strided_slice %38 {offsets = [0, 64], sizes = [2, 32], strides = [1, 1]} : vector<2x96xf32> to vector<2x32xf32>
    %44 = arith.mulf %42, %0 : vector<2x32xf32>
    %45 = arith.mulf %41, %40 : vector<2x32xf32>
    %46 = arith.addf %44, %45 : vector<2x32xf32>
    %47 = math.tanh %46 : vector<2x32xf32>
    %48 = arith.mulf %43, %47 : vector<2x32xf32>
    %49 = arith.truncf %48 : vector<2x32xf32> to vector<2x32xbf16>
    %c0_28 = arith.constant 0 : index
    %c0_29 = arith.constant 0 : index
    %50 = vector.load %arg8[%c0_28, %c0_29] : memref<32x16xbf16, #tpu.memory_space<vmem>>, vector<32x16xbf16>
    %cst_30 = arith.constant dense<0.000000e+00> : vector<2x16xf32>
    %51 = tpu.matmul %49, %50, %cst_30 {dimension_numbers = #tpu.dot_dimension_numbers<[1], [0], [0], [1], [0, 0, 1, 1], [], []>} : vector<2x32xbf16>, vector<32x16xbf16>, vector<2x16xf32> -> vector<2x16xf32>
    %c0_31 = arith.constant 0 : index
    %c128 = arith.constant 128 : index
    %52 = vector.load %arg9[%c0_31, %c128] : memref<1x144xf32, #tpu.memory_space<vmem>>, vector<1x16xf32>
    %53 = vector.broadcast %52 : vector<1x16xf32> to vector<2x16xf32>
    %54 = arith.addf %51, %53 : vector<2x16xf32>
    %c0_32 = arith.constant 0 : index
    %c0_33 = arith.constant 0 : index
    %55 = vector.load %arg10[%c0_32, %c0_33] : memref<2x16xf32, #tpu.memory_space<vmem>>, vector<2x16xf32>
    tpu.vector_store %arg10[%c0_32, %c0_33], %54 {strides = array<i32>} : memref<2x16xf32, #tpu.memory_space<vmem>>, vector<2x16xf32>,
    %c0_34 = arith.constant 0 : index
    %c0_35 = arith.constant 0 : index
    %56 = vector.load %arg11[%c0_34, %c0_35] : memref<2x32xf32, #tpu.memory_space<vmem>>, vector<2x32xf32>
    tpu.vector_store %arg11[%c0_34, %c0_35], %48 {strides = array<i32>} : memref<2x32xf32, #tpu.memory_space<vmem>>, vector<2x32xf32>,
    %c0_36 = arith.constant 0 : index
    %c0_37 = arith.constant 0 : index
    %57 = vector.load %arg12[%c0_36, %c0_37] : memref<2x32xf32, #tpu.memory_space<vmem>>, vector<2x32xf32>
    tpu.vector_store %arg12[%c0_36, %c0_37], %46 {strides = array<i32>} : memref<2x32xf32, #tpu.memory_space<vmem>>, vector<2x32xf32>,
    return
  }
}

</mosaic_0001>

<llo_original>
// kernel: dual_memory_controller_forward.1
$region0: #{dual_memory_controller_forward.1}
  #allocation0 [shape = 'u32[]', space=smem, size = 0x4, offset = 0x4, fixed_abs, tag = 'smem constant byte address 0x4 - core index']
  #allocation1 [shape = 'u32[144,128]{1,0:T(1,128)}', space=vmem, size = 0x12000, scoped, tag = 'internal scratch']
  %s0 = inlined_call_operand.vmem [shape: f32[2,8], index: 0, kind: input, shape index: {}]
  %s1 = inlined_call_operand.hbm [shape: f32[2,8], index: 1, kind: input, shape index: {}]
  %s2 = inlined_call_operand.hbm [shape: f32[2,8], index: 2, kind: input, shape index: {}]
  %s3 = inlined_call_operand.hbm [shape: f32[2,8], index: 3, kind: input, shape index: {}]
  %s4 = inlined_call_operand.hbm [shape: f32[2,8], index: 4, kind: input, shape index: {}]
  %s5 = inlined_call_operand.hbm [shape: f32[2,32], index: 5, kind: input, shape index: {}]
  %s6 = inlined_call_operand.hbm [shape: f32[2,32], index: 6, kind: input, shape index: {}]
  %s7 = inlined_call_operand.vmem [shape: bf16[72,128], index: 7, kind: input, shape index: {}]
  %s8 = inlined_call_operand.vmem [shape: bf16[32,16], index: 8, kind: input, shape index: {}]
  %s9 = inlined_call_operand.hbm [shape: f32[1,144], index: 9, kind: input, shape index: {}]
  %s10 = inlined_call_operand.hbm [shape: f32[2,16], index: 10, kind: output, shape index: {0}]
  %s11 = inlined_call_operand.hbm [shape: f32[2,32], index: 11, kind: output, shape index: {1}]
  %s12 = inlined_call_operand.hbm [shape: f32[2,32], index: 12, kind: output, shape index: {2}]
  %13 = xla_tuple %s10, %s11, %s12
  %s14 = sld [smem:[#allocation0]]
  $region94: #{dual_memory_controller_forward.1} parent=0
    _
  %s16 = ssub.s32 1, %s14
  %s17 = scalar_select 0, %s16, %s14
  $region1: #{dual_memory_controller_forward.1} parent=0
    #allocation2 [shape = 'u8[1024]{0}', space=vmem, size = 0x400, scoped, tag = 'input window, operand 1, single buffered']
    #allocation3 [shape = 's32[1]{0}', space=sflag, size = 0x4, scoped, tag = 'scoped memory for dual_memory_controller_forward.1']
    #allocation4 [shape = 's32[1]{0}', space=sflag, size = 0x4, scoped, tag = 'scoped memory for dual_memory_controller_forward.1']
    #allocation5 [shape = 'u8[1024]{0}', space=vmem, size = 0x400, scoped, tag = 'input window, operand 2, single buffered']
    #allocation6 [shape = 's32[1]{0}', space=sflag, size = 0x4, scoped, tag = 'scoped memory for dual_memory_controller_forward.1']
    #allocation7 [shape = 'u8[1024]{0}', space=vmem, size = 0x400, scoped, tag = 'input window, operand 3, single buffered']
    #allocation8 [shape = 'u8[1024]{0}', space=vmem, size = 0x400, scoped, tag = 'input window, operand 4, single buffered']
    #allocation9 [shape = 's32[1]{0}', space=sflag, size = 0x4, scoped, tag = 'scoped memory for dual_memory_controller_forward.1']
    #allocation10 [shape = 'u8[1024]{0}', space=vmem, size = 0x400, scoped, tag = 'input window, operand 5, single buffered']
    #allocation11 [shape = 'u8[1024]{0}', space=vmem, size = 0x400, scoped, tag = 'input window, operand 6, single buffered']
    #allocation12 [shape = 's32[1]{0}', space=sflag, size = 0x4, scoped, tag = 'scoped memory for dual_memory_controller_forward.1']
    #allocation13 [shape = 'u8[1024]{0}', space=vmem, size = 0x400, scoped, tag = 'input window, operand 9, single buffered']
    #allocation14 [shape = 'u8[1024]{0}', space=vmem, size = 0x400, scoped, tag = 'output window, operand 0, single buffered']
    #allocation15 [shape = 'u8[1024]{0}', space=vmem, size = 0x400, scoped, tag = 'output window, operand 1, single buffered']
    #allocation16 [shape = 's32[1]{0}', space=sflag, size = 0x4, scoped, tag = 'scoped memory for dual_memory_controller_forward.1']
    #allocation17 [shape = 'u8[1024]{0}', space=vmem, size = 0x400, scoped, tag = 'output window, operand 2, single buffered']
    %18 = vsyncpa [#allocation3], 0
    %19 = vsyncpa [#allocation6], 0
    %20 = vsyncpa [#allocation9], 0
    %21 = vsyncpa [#allocation12], 0
    %22 = vsyncpa [#allocation4], 0
    %23 = vsyncpa [#allocation16], 0
    // Predicated region
    $region2: #{dual_memory_controller_forward.1} parent=1 // pred_check
      _
    $region3: #{dual_memory_controller_forward.1} parent=1 // pred_check_branch
      %25 = sbr.rel (0) target = $region5
    $region4: #{dual_memory_controller_forward.1} parent=1 // pred_region
      _
    $region5: #{dual_memory_controller_forward.1} parent=1 // pred_fallthru
      _
    // Predicated region
    $region6: #{dual_memory_controller_forward.1} parent=1 // pred_check
      _
    $region7: #{dual_memory_controller_forward.1} parent=1 // pred_check_branch
      %27 = sbr.rel (0) target = $region9
    $region8: #{dual_memory_controller_forward.1} parent=1 // pred_region
      %s29 = ssub.s32 32, 32
      %30 = vsyncadd [#allocation3], %s29
      %s32 = sshll.u32 [#allocation2], 4
      %s33 = int_to_ptr.vmem [resolvable:$true] %s32
      %35 = dma.hbm_to_vmem [thread:$0]  %s1, 32, %s33, [#allocation3]
    $region9: #{dual_memory_controller_forward.1} parent=1 // pred_fallthru
      _
    // Predicated region
    $region10: #{dual_memory_controller_forward.1} parent=1 // pred_check
      _
    $region11: #{dual_memory_controller_forward.1} parent=1 // pred_check_branch
      %37 = sbr.rel (0) target = $region13
    $region12: #{dual_memory_controller_forward.1} parent=1 // pred_region
      %s39 = ssub.s32 32, 32
      %40 = vsyncadd [#allocation6], %s39
      %s42 = sshll.u32 [#allocation5], 4
      %s43 = int_to_ptr.vmem [resolvable:$true] %s42
      %45 = dma.hbm_to_vmem [thread:$0]  %s2, 32, %s43, [#allocation6]
    $region13: #{dual_memory_controller_forward.1} parent=1 // pred_fallthru
      _
    // Predicated region
    $region14: #{dual_memory_controller_forward.1} parent=1 // pred_check
      _
    $region15: #{dual_memory_controller_forward.1} parent=1 // pred_check_branch
      %47 = sbr.rel (0) target = $region17
    $region16: #{dual_memory_controller_forward.1} parent=1 // pred_region
      %s49 = ssub.s32 32, 32
      %50 = vsyncadd [#allocation6], %s49
      %s52 = sshll.u32 [#allocation7], 4
      %s53 = int_to_ptr.vmem [resolvable:$true] %s52
      %55 = dma.hbm_to_vmem [thread:$0]  %s3, 32, %s53, [#allocation6]
    $region17: #{dual_memory_controller_forward.1} parent=1 // pred_fallthru
      _
    // Predicated region
    $region18: #{dual_memory_controller_forward.1} parent=1 // pred_check
      _
    $region19: #{dual_memory_controller_forward.1} parent=1 // pred_check_branch
      %57 = sbr.rel (0) target = $region21
    $region20: #{dual_memory_controller_forward.1} parent=1 // pred_region
      %s59 = ssub.s32 32, 32
      %60 = vsyncadd [#allocation9], %s59
      %s62 = sshll.u32 [#allocation8], 4
      %s63 = int_to_ptr.vmem [resolvable:$true] %s62
      %65 = dma.hbm_to_vmem [thread:$0]  %s4, 32, %s63, [#allocation9]
    $region21: #{dual_memory_controller_forward.1} parent=1 // pred_fallthru
      _
    // Predicated region
    $region22: #{dual_memory_controller_forward.1} parent=1 // pred_check
      _
    $region23: #{dual_memory_controller_forward.1} parent=1 // pred_check_branch
      %67 = sbr.rel (0) target = $region25
    $region24: #{dual_memory_controller_forward.1} parent=1 // pred_region
      %s69 = ssub.s32 32, 32
      %70 = vsyncadd [#allocation9], %s69
      %s72 = sshll.u32 [#allocation10], 4
      %s73 = int_to_ptr.vmem [resolvable:$true] %s72
      %75 = dma.hbm_to_vmem [thread:$0]  %s5, 32, %s73, [#allocation9]
    $region25: #{dual_memory_controller_forward.1} parent=1 // pred_fallthru
      _
    // Predicated region
    $region26: #{dual_memory_controller_forward.1} parent=1 // pred_check
      _
    $region27: #{dual_memory_controller_forward.1} parent=1 // pred_check_branch
      %77 = sbr.rel (0) target = $region29
    $region28: #{dual_memory_controller_forward.1} parent=1 // pred_region
      %s79 = ssub.s32 32, 32
      %80 = vsyncadd [#allocation12], %s79
      %s82 = sshll.u32 [#allocation11], 4
      %s83 = int_to_ptr.vmem [resolvable:$true] %s82
      %85 = dma.hbm_to_vmem [thread:$0]  %s6, 32, %s83, [#allocation12]
    $region29: #{dual_memory_controller_forward.1} parent=1 // pred_fallthru
      _
    // Predicated region
    $region30: #{dual_memory_controller_forward.1} parent=1 // pred_check
      _
    $region31: #{dual_memory_controller_forward.1} parent=1 // pred_check_branch
      %87 = sbr.rel (0) target = $region33
    $region32: #{dual_memory_controller_forward.1} parent=1 // pred_region
      _
    $region33: #{dual_memory_controller_forward.1} parent=1 // pred_fallthru
      _
    // Predicated region
    $region34: #{dual_memory_controller_forward.1} parent=1 // pred_check
      _
    $region35: #{dual_memory_controller_forward.1} parent=1 // pred_check_branch
      %89 = sbr.rel (0) target = $region37
    $region36: #{dual_memory_controller_forward.1} parent=1 // pred_region
      _
    $region37: #{dual_memory_controller_forward.1} parent=1 // pred_fallthru
      _
    // Predicated region
    $region38: #{dual_memory_controller_forward.1} parent=1 // pred_check
      _
    $region39: #{dual_memory_controller_forward.1} parent=1 // pred_check_branch
      %91 = sbr.rel (0) target = $region41
    $region40: #{dual_memory_controller_forward.1} parent=1 // pred_region
      %s93 = ssub.s32 32, 32
      %94 = vsyncadd [#allocation12], %s93
      %s96 = sshll.u32 [#allocation13], 4
      %s97 = int_to_ptr.vmem [resolvable:$true] %s96
      %99 = dma.hbm_to_vmem [thread:$0]  %s9, 32, %s97, [#allocation12]
    $region41: #{dual_memory_controller_forward.1} parent=1 // pred_fallthru
      _
    // Predicated region
    $region42: #{dual_memory_controller_forward.1} parent=1 // pred_check
      _
    $region43: #{dual_memory_controller_forward.1} parent=1 // pred_check_branch
      %101 = sbr.rel (0) target = $region45
    $region44: #{dual_memory_controller_forward.1} parent=1 // pred_region
      %102 = dma.done [#allocation3], 32
    $region45: #{dual_memory_controller_forward.1} parent=1 // pred_fallthru
      _
    // Predicated region
    $region46: #{dual_memory_controller_forward.1} parent=1 // pred_check
      _
    $region47: #{dual_memory_controller_forward.1} parent=1 // pred_check_branch
      %104 = sbr.rel (0) target = $region49
    $region48: #{dual_memory_controller_forward.1} parent=1 // pred_region
      %105 = dma.done [#allocation6], 32
    $region49: #{dual_memory_controller_forward.1} parent=1 // pred_fallthru
      _
    // Predicated region
    $region50: #{dual_memory_controller_forward.1} parent=1 // pred_check
      _
    $region51: #{dual_memory_controller_forward.1} parent=1 // pred_check_branch
      %107 = sbr.rel (0) target = $region53
    $region52: #{dual_memory_controller_forward.1} parent=1 // pred_region
      %108 = dma.done [#allocation6], 32
    $region53: #{dual_memory_controller_forward.1} parent=1 // pred_fallthru
      _
    // Predicated region
    $region54: #{dual_memory_controller_forward.1} parent=1 // pred_check
      _
    $region55: #{dual_memory_controller_forward.1} parent=1 // pred_check_branch
      %110 = sbr.rel (0) target = $region57
    $region56: #{dual_memory_controller_forward.1} parent=1 // pred_region
      %111 = dma.done [#allocation9], 32
    $region57: #{dual_memory_controller_forward.1} parent=1 // pred_fallthru
      _
    // Predicated region
    $region58: #{dual_memory_controller_forward.1} parent=1 // pred_check
      _
    $region59: #{dual_memory_controller_forward.1} parent=1 // pred_check_branch
      %113 = sbr.rel (0) target = $region61
    $region60: #{dual_memory_controller_forward.1} parent=1 // pred_region
      %114 = dma.done [#allocation9], 32
    $region61: #{dual_memory_controller_forward.1} parent=1 // pred_fallthru
      _
    // Predicated region
    $region62: #{dual_memory_controller_forward.1} parent=1 // pred_check
      _
    $region63: #{dual_memory_controller_forward.1} parent=1 // pred_check_branch
      %116 = sbr.rel (0) target = $region65
    $region64: #{dual_memory_controller_forward.1} parent=1 // pred_region
      %117 = dma.done [#allocation12], 32
    $region65: #{dual_memory_controller_forward.1} parent=1 // pred_fallthru
      _
    // Predicated region
    $region66: #{dual_memory_controller_forward.1} parent=1 // pred_check
      _
    $region67: #{dual_memory_controller_forward.1} parent=1 // pred_check_branch
      %119 = sbr.rel (0) target = $region69
    $region68: #{dual_memory_controller_forward.1} parent=1 // pred_region
      %120 = dma.done [#allocation12], 32
    $region69: #{dual_memory_controller_forward.1} parent=1 // pred_fallthru
      _
    %v122 = vld [vmem:[#allocation11] sm:$0x3]
    %v123 = vld [vmem:[#allocation13] sm:$0x1]
    %v124 = vld [vmem:[%s0] sm:$0x3]
    %v125 = vpack.c.bf16 %v124, %v124
    %v126 = vld [vmem:[%s7] sm:$0xf]
    %vm127 = vcmask 64512
    %v129 = vsel %vm127, %v125, 0
    %vm131 = vcmask 1043456
    %v133 = vsel %vm131, %v126, 0
    %135 = vmatprep.subr.bf16.mxu0 0
    %136 = vmatpush1.bf16.msra.mxu0 0
    %137 = vmatprep.subr.bf16.mxu0 0
    %138 = vmatpush1.bf16.msra.mxu0 0
    %139 = vmatprep.subr.bf16.mxu0 0
    %140 = vmatpush1.bf16.msra.mxu0 0
    %141 = vmatprep.subr.bf16.mxu0 0
    %142 = vmatpush1.bf16.msra.mxu0 0
    %143 = vmatprep.subr.bf16.mxu0 0
    %144 = vmatpush1.bf16.msra.mxu0 0
    %145 = vmatprep.subr.bf16.mxu0 0
    %146 = vmatpush1.bf16.msra.mxu0 0
    %147 = vmatprep.subr.bf16.mxu0 0
    %148 = vmatpush1.bf16.msra.mxu0 0
    %149 = vmatprep.subr.bf16.mxu0 0
    %150 = vmatpush1.bf16.msra.mxu0 %v133
    %151 = vmatprep.subr.bf16.mxu0 0
    %152 = vmatpush2.bf16.msra.mxu0 0
    %153 = vmatprep.subr.bf16.mxu0 0
    %154 = vmatpush2.bf16.msra.mxu0 0
    %155 = vmatprep.subr.bf16.mxu0 0
    %156 = vmatpush2.bf16.msra.mxu0 0
    %157 = vmatprep.subr.bf16.mxu0 0
    %158 = vmatpush2.bf16.msra.mxu0 0
    %159 = vmatprep.subr.bf16.mxu0 0
    %160 = vmatpush2.bf16.msra.mxu0 0
    %161 = vmatprep.subr.bf16.mxu0 0
    %162 = vmatpush2.bf16.msra.mxu0 0
    %163 = vmatprep.subr.bf16.mxu0 0
    %164 = vmatpush2.bf16.msra.mxu0 0
    %165 = vmatprep.subr.bf16.mxu0 0
    %166 = vmatpush2.bf16.msra.mxu0 0
    %167 = vmatprep.mubr.bf16.mxu0 0
    %168 = vmatmul.mubr.bf16.gmra.mxu0 %v129
    %v169 = vpop.f32.mrf.mxu0
    %v170 = vadd.f32 0.0, %v169
    %v171 = vpop.f32.mrf.mxu0
    %v172 = vpop.f32.mrf.mxu0
    %v173 = vpop.f32.mrf.mxu0
    %174 = vdwg.mxu0
    %v176 = vlaneseq
    %v177 = vshrl.u32 %v176, 7
    %v178 = vsub.s32 0, %v177
    %v179 = vrot.slane %v123, %v178
    %v181 = vadd.f32 %v179, %v170
    %v182 = vld [vmem:[#allocation2] sm:$0x3]
    %v183 = vpack.c.bf16 %v182, %v182
    %v184 = vld [vmem:[%s7 + $0x4] sm:$0xf]
    %v186 = vsel %vm127, %v183, 0
    %v189 = vsel %vm131, %v184, 0
    %191 = vmatprep.subr.bf16.mxu0 0
    %192 = vmatpush1.bf16.msra.mxu0 0
    %193 = vmatprep.subr.bf16.mxu0 0
    %194 = vmatpush1.bf16.msra.mxu0 0
    %195 = vmatprep.subr.bf16.mxu0 0
    %196 = vmatpush1.bf16.msra.mxu0 0
    %197 = vmatprep.subr.bf16.mxu0 0
    %198 = vmatpush1.bf16.msra.mxu0 0
    %199 = vmatprep.subr.bf16.mxu0 0
    %200 = vmatpush1.bf16.msra.mxu0 0
    %201 = vmatprep.subr.bf16.mxu0 0
    %202 = vmatpush1.bf16.msra.mxu0 0
    %203 = vmatprep.subr.bf16.mxu0 0
    %204 = vmatpush1.bf16.msra.mxu0 0
    %205 = vmatprep.subr.bf16.mxu0 0
    %206 = vmatpush1.bf16.msra.mxu0 %v189
    %207 = vmatprep.subr.bf16.mxu0 0
    %208 = vmatpush2.bf16.msra.mxu0 0
    %209 = vmatprep.subr.bf16.mxu0 0
    %210 = vmatpush2.bf16.msra.mxu0 0
    %211 = vmatprep.subr.bf16.mxu0 0
    %212 = vmatpush2.bf16.msra.mxu0 0
    %213 = vmatprep.subr.bf16.mxu0 0
    %214 = vmatpush2.bf16.msra.mxu0 0
    %215 = vmatprep.subr.bf16.mxu0 0
    %216 = vmatpush2.bf16.msra.mxu0 0
    %217 = vmatprep.subr.bf16.mxu0 0
    %218 = vmatpush2.bf16.msra.mxu0 0
    %219 = vmatprep.subr.bf16.mxu0 0
    %220 = vmatpush2.bf16.msra.mxu0 0
    %221 = vmatprep.subr.bf16.mxu0 0
    %222 = vmatpush2.bf16.msra.mxu0 0
    %223 = vmatprep.mubr.bf16.mxu0 0
    %224 = vmatmul.mubr.bf16.gmra.mxu0 %v186
    %v225 = vpop.f32.mrf.mxu0
    %v226 = vadd.f32 0.0, %v225
    %v227 = vpop.f32.mrf.mxu0
    %v228 = vpop.f32.mrf.mxu0
    %v229 = vpop.f32.mrf.mxu0
    %230 = vdwg.mxu0
    %v231 = vadd.f32 %v181, %v226
    %v232 = vld [vmem:[#allocation5] sm:$0x3]
    %v233 = vpack.c.bf16 %v232, %v232
    %v234 = vld [vmem:[%s7 + $0x8] sm:$0xf]
    %v236 = vsel %vm127, %v233, 0
    %v239 = vsel %vm131, %v234, 0
    %241 = vmatprep.subr.bf16.mxu0 0
    %242 = vmatpush1.bf16.msra.mxu0 0
    %243 = vmatprep.subr.bf16.mxu0 0
    %244 = vmatpush1.bf16.msra.mxu0 0
    %245 = vmatprep.subr.bf16.mxu0 0
    %246 = vmatpush1.bf16.msra.mxu0 0
    %247 = vmatprep.subr.bf16.mxu0 0
    %248 = vmatpush1.bf16.msra.mxu0 0
    %249 = vmatprep.subr.bf16.mxu0 0
    %250 = vmatpush1.bf16.msra.mxu0 0
    %251 = vmatprep.subr.bf16.mxu0 0
    %252 = vmatpush1.bf16.msra.mxu0 0
    %253 = vmatprep.subr.bf16.mxu0 0
    %254 = vmatpush1.bf16.msra.mxu0 0
    %255 = vmatprep.subr.bf16.mxu0 0
    %256 = vmatpush1.bf16.msra.mxu0 %v239
    %257 = vmatprep.subr.bf16.mxu0 0
    %258 = vmatpush2.bf16.msra.mxu0 0
    %259 = vmatprep.subr.bf16.mxu0 0
    %260 = vmatpush2.bf16.msra.mxu0 0
    %261 = vmatprep.subr.bf16.mxu0 0
    %262 = vmatpush2.bf16.msra.mxu0 0
    %263 = vmatprep.subr.bf16.mxu0 0
    %264 = vmatpush2.bf16.msra.mxu0 0
    %265 = vmatprep.subr.bf16.mxu0 0
    %266 = vmatpush2.bf16.msra.mxu0 0
    %267 = vmatprep.subr.bf16.mxu0 0
    %268 = vmatpush2.bf16.msra.mxu0 0
    %269 = vmatprep.subr.bf16.mxu0 0
    %270 = vmatpush2.bf16.msra.mxu0 0
    %271 = vmatprep.subr.bf16.mxu0 0
    %272 = vmatpush2.bf16.msra.mxu0 0
    %273 = vmatprep.mubr.bf16.mxu0 0
    %274 = vmatmul.mubr.bf16.gmra.mxu0 %v236
    %v275 = vpop.f32.mrf.mxu0
    %v276 = vadd.f32 0.0, %v275
    %v277 = vpop.f32.mrf.mxu0
    %v278 = vpop.f32.mrf.mxu0
    %v279 = vpop.f32.mrf.mxu0
    %280 = vdwg.mxu0
    %v281 = vadd.f32 %v231, %v276
    %v282 = vld [vmem:[#allocation7] sm:$0x3]
    %v283 = vpack.c.bf16 %v282, %v282
    %v284 = vld [vmem:[%s7 + $0xc] sm:$0xf]
    %v286 = vsel %vm127, %v283, 0
    %v289 = vsel %vm131, %v284, 0
    %291 = vmatprep.subr.bf16.mxu0 0
    %292 = vmatpush1.bf16.msra.mxu0 0
    %293 = vmatprep.subr.bf16.mxu0 0
    %294 = vmatpush1.bf16.msra.mxu0 0
    %295 = vmatprep.subr.bf16.mxu0 0
    %296 = vmatpush1.bf16.msra.mxu0 0
    %297 = vmatprep.subr.bf16.mxu0 0
    %298 = vmatpush1.bf16.msra.mxu0 0
    %299 = vmatprep.subr.bf16.mxu0 0
    %300 = vmatpush1.bf16.msra.mxu0 0
    %301 = vmatprep.subr.bf16.mxu0 0
    %302 = vmatpush1.bf16.msra.mxu0 0
    %303 = vmatprep.subr.bf16.mxu0 0
    %304 = vmatpush1.bf16.msra.mxu0 0
    %305 = vmatprep.subr.bf16.mxu0 0
    %306 = vmatpush1.bf16.msra.mxu0 %v289
    %307 = vmatprep.subr.bf16.mxu0 0
    %308 = vmatpush2.bf16.msra.mxu0 0
    %309 = vmatprep.subr.bf16.mxu0 0
    %310 = vmatpush2.bf16.msra.mxu0 0
    %311 = vmatprep.subr.bf16.mxu0 0
    %312 = vmatpush2.bf16.msra.mxu0 0
    %313 = vmatprep.subr.bf16.mxu0 0
    %314 = vmatpush2.bf16.msra.mxu0 0
    %315 = vmatprep.subr.bf16.mxu0 0
    %316 = vmatpush2.bf16.msra.mxu0 0
    %317 = vmatprep.subr.bf16.mxu0 0
    %318 = vmatpush2.bf16.msra.mxu0 0
    %319 = vmatprep.subr.bf16.mxu0 0
    %320 = vmatpush2.bf16.msra.mxu0 0
    %321 = vmatprep.subr.bf16.mxu0 0
    %322 = vmatpush2.bf16.msra.mxu0 0
    %323 = vmatprep.mubr.bf16.mxu0 0
    %324 = vmatmul.mubr.bf16.gmra.mxu0 %v286
    %v325 = vpop.f32.mrf.mxu0
    %v326 = vadd.f32 0.0, %v325
    %v327 = vpop.f32.mrf.mxu0
    %v328 = vpop.f32.mrf.mxu0
    %v329 = vpop.f32.mrf.mxu0
    %330 = vdwg.mxu0
    %v331 = vadd.f32 %v281, %v326
    %v332 = vld [vmem:[#allocation8] sm:$0x3]
    %v333 = vpack.c.bf16 %v332, %v332
    %v334 = vld [vmem:[%s7 + $0x10] sm:$0xf]
    %v336 = vsel %vm127, %v333, 0
    %v339 = vsel %vm131, %v334, 0
    %341 = vmatprep.subr.bf16.mxu0 0
    %342 = vmatpush1.bf16.msra.mxu0 0
    %343 = vmatprep.subr.bf16.mxu0 0
    %344 = vmatpush1.bf16.msra.mxu0 0
    %345 = vmatprep.subr.bf16.mxu0 0
    %346 = vmatpush1.bf16.msra.mxu0 0
    %347 = vmatprep.subr.bf16.mxu0 0
    %348 = vmatpush1.bf16.msra.mxu0 0
    %349 = vmatprep.subr.bf16.mxu0 0
    %350 = vmatpush1.bf16.msra.mxu0 0
    %351 = vmatprep.subr.bf16.mxu0 0
    %352 = vmatpush1.bf16.msra.mxu0 0
    %353 = vmatprep.subr.bf16.mxu0 0
    %354 = vmatpush1.bf16.msra.mxu0 0
    %355 = vmatprep.subr.bf16.mxu0 0
    %356 = vmatpush1.bf16.msra.mxu0 %v339
    %357 = vmatprep.subr.bf16.mxu0 0
    %358 = vmatpush2.bf16.msra.mxu0 0
    %359 = vmatprep.subr.bf16.mxu0 0
    %360 = vmatpush2.bf16.msra.mxu0 0
    %361 = vmatprep.subr.bf16.mxu0 0
    %362 = vmatpush2.bf16.msra.mxu0 0
    %363 = vmatprep.subr.bf16.mxu0 0
    %364 = vmatpush2.bf16.msra.mxu0 0
    %365 = vmatprep.subr.bf16.mxu0 0
    %366 = vmatpush2.bf16.msra.mxu0 0
    %367 = vmatprep.subr.bf16.mxu0 0
    %368 = vmatpush2.bf16.msra.mxu0 0
    %369 = vmatprep.subr.bf16.mxu0 0
    %370 = vmatpush2.bf16.msra.mxu0 0
    %371 = vmatprep.subr.bf16.mxu0 0
    %372 = vmatpush2.bf16.msra.mxu0 0
    %373 = vmatprep.mubr.bf16.mxu0 0
    %374 = vmatmul.mubr.bf16.gmra.mxu0 %v336
    %v375 = vpop.f32.mrf.mxu0
    %v376 = vadd.f32 0.0, %v375
    %v377 = vpop.f32.mrf.mxu0
    %v378 = vpop.f32.mrf.mxu0
    %v379 = vpop.f32.mrf.mxu0
    %380 = vdwg.mxu0
    %v381 = vadd.f32 %v331, %v376
    %v382 = vld [vmem:[#allocation10] sm:$0x3]
    %v383 = vpack.c.bf16 %v382, %v382
    %v384 = vld [vmem:[%s7 + $0x14] sm:$0xf]
    %v385 = vld [vmem:[%s7 + $0x18] sm:$0xf]
    %v386 = vld [vmem:[%s7 + $0x1c] sm:$0xf]
    %v387 = vld [vmem:[%s7 + $0x20] sm:$0xf]
    %v392 = vunpack.c.l.b16 %v384
    %v393 = vunpack.c.l.b16 %v385
    %v394 = vunpack.c.l.b16 %v386
    %v395 = vunpack.c.l.b16 %v387
    %v396 = vpack.c.b16 %v393, %v392
    %v397 = vpack.c.b16 %v395, %v394
    %vm400 = vcmask 261120
    %v402 = vsel %vm400, %v383, 0
    %404 = vmatprep.subr.bf16.mxu0 0
    %405 = vmatpush1.bf16.msra.mxu0 0
    %406 = vmatprep.subr.bf16.mxu0 0
    %407 = vmatpush1.bf16.msra.mxu0 0
    %408 = vmatprep.subr.bf16.mxu0 0
    %409 = vmatpush1.bf16.msra.mxu0 0
    %410 = vmatprep.subr.bf16.mxu0 0
    %411 = vmatpush1.bf16.msra.mxu0 0
    %412 = vmatprep.subr.bf16.mxu0 0
    %413 = vmatpush1.bf16.msra.mxu0 0
    %414 = vmatprep.subr.bf16.mxu0 0
    %415 = vmatpush1.bf16.msra.mxu0 0
    %416 = vmatprep.subr.bf16.mxu0 0
    %417 = vmatpush1.bf16.msra.mxu0 %v397
    %418 = vmatprep.subr.bf16.mxu0 0
    %419 = vmatpush1.bf16.msra.mxu0 %v396
    %420 = vmatprep.subr.bf16.mxu0 0
    %421 = vmatpush2.bf16.msra.mxu0 0
    %422 = vmatprep.subr.bf16.mxu0 0
    %423 = vmatpush2.bf16.msra.mxu0 0
    %424 = vmatprep.subr.bf16.mxu0 0
    %425 = vmatpush2.bf16.msra.mxu0 0
    %426 = vmatprep.subr.bf16.mxu0 0
    %427 = vmatpush2.bf16.msra.mxu0 0
    %428 = vmatprep.subr.bf16.mxu0 0
    %429 = vmatpush2.bf16.msra.mxu0 0
    %430 = vmatprep.subr.bf16.mxu0 0
    %431 = vmatpush2.bf16.msra.mxu0 0
    %432 = vmatprep.subr.bf16.mxu0 0
    %433 = vmatpush2.bf16.msra.mxu0 0
    %434 = vmatprep.subr.bf16.mxu0 0
    %435 = vmatpush2.bf16.msra.mxu0 0
    %436 = vmatprep.mubr.bf16.mxu0 0
    %437 = vmatmul.mubr.bf16.gmra.mxu0 %v402
    %v438 = vpop.f32.mrf.mxu0
    %v439 = vadd.f32 0.0, %v438
    %v440 = vpop.f32.mrf.mxu0
    %v441 = vpop.f32.mrf.mxu0
    %v442 = vpop.f32.mrf.mxu0
    %443 = vdwg.mxu0
    %v444 = vadd.f32 %v381, %v439
    %v445 = vxor.u32 %v444, 2147483648
    %v446 = vmul.f32 %v445, 1.442695
    %v447 = vpow.pop %v446
    %v448 = vadd.f32 %v447, 1.0
    %v449 = vrcp.pop %v448
    %v450 = vmul.f32 1.0, %v449
    %v451 = vtanh.pop %v444
    %453 = vrot.lane.b32.xlu0 %v122, 32
    %v454 = vpop.permute.xlu0 %453
    %v456 = vmul.f32 %v450, %v454
    %458 = vrot.lane.b32.xlu0 %v451, 32
    %v459 = vpop.permute.xlu0 %458
    %v461 = vmul.f32 %v450, %v459
    %463 = vrot.lane.b32.xlu0 %v461, 32
    %v464 = vpop.permute.xlu0 %463
    %v466 = vadd.f32 %v456, %v464
    %v467 = vtanh.pop %v466
    %469 = vrot.lane.b32.xlu0 %v467, 32
    %v470 = vpop.permute.xlu0 %469
    %v472 = vmul.f32 %v450, %v470
    %v473 = vpack.c.bf16 %v472, %v472
    %v474 = vld [vmem:[%s8] sm:$0xf]
    %v475 = vld [vmem:[%s8 + $0x4] sm:$0xf]
    %v476 = vld [vmem:[%s8 + $0x8] sm:$0xf]
    %v477 = vld [vmem:[%s8 + $0xc] sm:$0xf]
    %v478 = vld [vmem:[#allocation13 + $0x1] sm:$0x1]
    %v480 = vlaneseq
    %v481 = vshrl.u32 %v480, 7
    %v482 = vsub.s32 0, %v481
    %v483 = vrot.slane %v478, %v482
    %486 = vrot.lane.b32.xlu0 %v473, 64
    %v487 = vpop.permute.xlu0 %486
    %v492 = vunpack.c.l.b16 %v474
    %v493 = vunpack.c.l.b16 %v475
    %v494 = vunpack.c.l.b16 %v476
    %v495 = vunpack.c.l.b16 %v477
    %v496 = vpack.c.b16 %v493, %v492
    %v497 = vpack.c.b16 %v495, %v494
    %v501 = vsel %vm400, %v487, 0
    %503 = vmatprep.subr.bf16.mxu0 0
    %504 = vmatpush1.bf16.msra.mxu0 0
    %505 = vmatprep.subr.bf16.mxu0 0
    %506 = vmatpush1.bf16.msra.mxu0 0
    %507 = vmatprep.subr.bf16.mxu0 0
    %508 = vmatpush1.bf16.msra.mxu0 0
    %509 = vmatprep.subr.bf16.mxu0 0
    %510 = vmatpush1.bf16.msra.mxu0 0
    %511 = vmatprep.subr.bf16.mxu0 0
    %512 = vmatpush1.bf16.msra.mxu0 0
    %513 = vmatprep.subr.bf16.mxu0 0
    %514 = vmatpush1.bf16.msra.mxu0 0
    %515 = vmatprep.subr.bf16.mxu0 0
    %516 = vmatpush1.bf16.msra.mxu0 %v497
    %517 = vmatprep.subr.bf16.mxu0 0
    %518 = vmatpush1.bf16.msra.mxu0 %v496
    %519 = vmatprep.subr.bf16.mxu0 0
    %520 = vmatpush2.bf16.msra.mxu0 0
    %521 = vmatprep.subr.bf16.mxu0 0
    %522 = vmatpush2.bf16.msra.mxu0 0
    %523 = vmatprep.subr.bf16.mxu0 0
    %524 = vmatpush2.bf16.msra.mxu0 0
    %525 = vmatprep.subr.bf16.mxu0 0
    %526 = vmatpush2.bf16.msra.mxu0 0
    %527 = vmatprep.subr.bf16.mxu0 0
    %528 = vmatpush2.bf16.msra.mxu0 0
    %529 = vmatprep.subr.bf16.mxu0 0
    %530 = vmatpush2.bf16.msra.mxu0 0
    %531 = vmatprep.subr.bf16.mxu0 0
    %532 = vmatpush2.bf16.msra.mxu0 0
    %533 = vmatprep.subr.bf16.mxu0 0
    %534 = vmatpush2.bf16.msra.mxu0 0
    %535 = vmatprep.mubr.bf16.mxu0 0
    %536 = vmatmul.mubr.bf16.gmra.mxu0 %v501
    %v537 = vpop.f32.mrf.mxu0
    %v538 = vadd.f32 %v483, %v537
    %v539 = vpop.f32.mrf.mxu0
    %v540 = vpop.f32.mrf.mxu0
    %v541 = vpop.f32.mrf.mxu0
    %542 = vdwg.mxu0
    %vm543 = vcmask 123904
    %544 = vst.msk [vmem:[#allocation14] sm:$0x3] %vm543, %v538
    %546 = vrot.lane.b32.xlu0 %v472, 64
    %v547 = vpop.permute.xlu0 %546
    %vm549 = vcmask 254976
    %550 = vst.msk [vmem:[#allocation15] sm:$0x3] %vm549, %v547
    %552 = vrot.lane.b32.xlu0 %v466, 96
    %v553 = vpop.permute.xlu0 %552
    %555 = vst.msk [vmem:[#allocation17] sm:$0x3] %vm549, %v553
    // Predicated region
    $region70: #{dual_memory_controller_forward.1} parent=1 // pred_check
      _
    $region71: #{dual_memory_controller_forward.1} parent=1 // pred_check_branch
      %557 = sbr.rel (0) target = $region73
    $region72: #{dual_memory_controller_forward.1} parent=1 // pred_region
      %s559 = ssub.s32 32, 32
      %560 = vsyncadd [#allocation4], %s559
      %s562 = sshll.u32 [#allocation14], 4
      %s563 = int_to_ptr.vmem [resolvable:$true] %s562
      %565 = dma.vmem_to_hbm [thread:$0]  %s563, 32, %s10, [#allocation4]
    $region73: #{dual_memory_controller_forward.1} parent=1 // pred_fallthru
      _
    // Predicated region
    $region74: #{dual_memory_controller_forward.1} parent=1 // pred_check
      _
    $region75: #{dual_memory_controller_forward.1} parent=1 // pred_check_branch
      %567 = sbr.rel (0) target = $region77
    $region76: #{dual_memory_controller_forward.1} parent=1 // pred_region
      %s569 = ssub.s32 32, 32
      %570 = vsyncadd [#allocation16], %s569
      %s572 = sshll.u32 [#allocation15], 4
      %s573 = int_to_ptr.vmem [resolvable:$true] %s572
      %575 = dma.vmem_to_hbm [thread:$0]  %s573, 32, %s11, [#allocation16]
    $region77: #{dual_memory_controller_forward.1} parent=1 // pred_fallthru
      _
    // Predicated region
    $region78: #{dual_memory_controller_forward.1} parent=1 // pred_check
      _
    $region79: #{dual_memory_controller_forward.1} parent=1 // pred_check_branch
      %577 = sbr.rel (0) target = $region81
    $region80: #{dual_memory_controller_forward.1} parent=1 // pred_region
      %s579 = ssub.s32 32, 32
      %580 = vsyncadd [#allocation16], %s579
      %s582 = sshll.u32 [#allocation17], 4
      %s583 = int_to_ptr.vmem [resolvable:$true] %s582
      %585 = dma.vmem_to_hbm [thread:$0]  %s583, 32, %s12, [#allocation16]
    $region81: #{dual_memory_controller_forward.1} parent=1 // pred_fallthru
      _
    // Predicated region
    $region82: #{dual_memory_controller_forward.1} parent=1 // pred_check
      _
    $region83: #{dual_memory_controller_forward.1} parent=1 // pred_check_branch
      %587 = sbr.rel (0) target = $region85
    $region84: #{dual_memory_controller_forward.1} parent=1 // pred_region
      %588 = dma.done [#allocation4], 32
    $region85: #{dual_memory_controller_forward.1} parent=1 // pred_fallthru
      _
    // Predicated region
    $region86: #{dual_memory_controller_forward.1} parent=1 // pred_check
      _
    $region87: #{dual_memory_controller_forward.1} parent=1 // pred_check_branch
      %590 = sbr.rel (0) target = $region89
    $region88: #{dual_memory_controller_forward.1} parent=1 // pred_region
      %591 = dma.done [#allocation16], 32
    $region89: #{dual_memory_controller_forward.1} parent=1 // pred_fallthru
      _
    // Predicated region
    $region90: #{dual_memory_controller_forward.1} parent=1 // pred_check
      _
    $region91: #{dual_memory_controller_forward.1} parent=1 // pred_check_branch
      %593 = sbr.rel (0) target = $region93
    $region92: #{dual_memory_controller_forward.1} parent=1 // pred_region
      %594 = dma.done [#allocation16], 32
    $region93: #{dual_memory_controller_forward.1} parent=1 // pred_fallthru
      _
    %595 = vsyncpa [#allocation3], 1
    %596 = vsyncpa [#allocation6], 1
    %597 = vsyncpa [#allocation9], 1
    %598 = vsyncpa [#allocation12], 1
    %599 = vsyncpa [#allocation4], 1
    %600 = vsyncpa [#allocation16], 1

</llo_original>
